<compile_context>
chip_gen: v6e
topology: v6e:2x2x1
jax: 0.10.0
libtpu: 0.0.40
codegen_flags: <defaults>
</compile_context>

<pallas_src>
import functools

import jax
import jax.numpy as jnp
from jax.experimental import pallas as pl
from jax.experimental.pallas import tpu as pltpu


def _round_up(x, m):
    return (x + m - 1) // m * m


def _gemm_bias_kernel(w_ref, x_ref, b_ref, o_ref):
    # w_ref: (Cop, Kp) mm_dtype   x_ref: (Kp, TM) mm_dtype
    # b_ref: (Cop, 1)  f32        o_ref: (Cop, TM) out dtype
    acc = jnp.dot(w_ref[...], x_ref[...], preferred_element_type=jnp.float32)
    o_ref[...] = (acc + b_ref[...]).astype(o_ref.dtype)


@functools.partial(jax.jit, static_argnames=("stride", "padding", "tile_m"))
def coordconv2d(x_nchw, weight, bias, *, stride=1, padding=0, tile_m=2048):
    """CoordConv2d forward.  x_nchw: (N, C, H, W); weight: (Cout, C+2, KH, KW)."""
    N, C, H, W = x_nchw.shape
    Cout, Cin2, KH, KW = weight.shape
    assert Cin2 == C + 2, "weight must expect C+2 input channels"
    in_dtype = x_nchw.dtype
    out_dtype = in_dtype

    # bf16 coordinate channels are exact only up to 256 (8-bit mantissa);
    # beyond that, keep the matmul operands in f32 to preserve CoordConv math.
    mm_dtype = jnp.bfloat16 if max(H, W) <= 256 else jnp.float32

    # Coordinate channels (ys, xs = meshgrid(arange(H), arange(W), indexing='ij')):
    #   xs[i, j] = j (width index), ys[i, j] = i (height index).
    ys = jax.lax.broadcasted_iota(in_dtype, (H, W), 0)
    xs = jax.lax.broadcasted_iota(in_dtype, (H, W), 1)
    xs_b = jnp.broadcast_to(xs[None, None], (N, 1, H, W))
    ys_b = jnp.broadcast_to(ys[None, None], (N, 1, H, W))
    # Concatenation order matches the module: (input, xs, ys).
    x_aug = jnp.concatenate([x_nchw, xs_b, ys_b], axis=1)  # (N, C+2, H, W)

    if padding:
        x_aug = jnp.pad(
            x_aug, ((0, 0), (0, 0), (padding, padding), (padding, padding)))
    Hp, Wp = x_aug.shape[2], x_aug.shape[3]
    Ho = (Hp - KH) // stride + 1
    Wo = (Wp - KW) // stride + 1
    P = Ho * Wo
    M = N * P
    Kd = KH * KW * Cin2

    # ---- host-side im2col, built directly in the transposed (K, M) layout ----
    # Leading-dim permute (cheap) with the matmul-dtype cast fused in.
    x_cfirst = jnp.transpose(x_aug, (1, 0, 2, 3)).astype(mm_dtype)  # (Cin2,N,Hp,Wp)
    cols = []
    for kh in range(KH):
        for kw in range(KW):
            cols.append(
                x_cfirst[:, :, kh:kh + stride * Ho:stride,
                         kw:kw + stride * Wo:stride].reshape(Cin2, M))
    x_col = jnp.concatenate(cols, axis=0)  # (Kd, M), K ordered (kh, kw, c)

    # PyTorch weight (Cout, Cin2, KH, KW) -> (Cout, KH*KW*Cin2) matching the
    # (kh, kw, c) feature ordering above.  Tiny tensor; transpose is free.
    w_col = jnp.transpose(weight, (0, 2, 3, 1)).reshape(Cout, Kd).astype(mm_dtype)

    # ---- padding to TPU-friendly shapes (zeros are mathematically inert) ----
    mm_bytes = jnp.dtype(mm_dtype).itemsize
    out_bytes = jnp.dtype(out_dtype).itemsize
    Kp = _round_up(Kd, 64)      # K sits on sublanes of X^T / lanes of tiny W
    Cop = _round_up(Cout, 16)   # Cout only needs sublane padding now

    # ---- choose the M tile: big enough to amortize per-step overhead, small
    # enough to respect v7x's 64 MiB VMEM; keep the grid >= 2 when possible so
    # both v7x TensorCores get work.
    M128 = _round_up(M, 128)
    per_m = 2 * (Kp * mm_bytes + Cop * out_bytes)          # dbl-buffered bytes per M row
    tm_cap = max(128, ((24 << 20) // per_m) // 128 * 128)  # ~24 MiB per-step budget
    TM = min(tile_m, tm_cap)
    if M128 <= TM:
        if M128 >= 256 and (M128 // 128) % 2 == 0:
            TM = M128 // 2      # two even tiles -> megacore-friendly
        else:
            TM = M128
    Mp = _round_up(M128, TM)

    x_col = jnp.pad(x_col, ((0, Kp - Kd), (0, Mp - M)))
    w_col = jnp.pad(w_col, ((0, Cop - Cout), (0, Kp - Kd)))
    b_col = jnp.pad(bias.astype(jnp.float32).reshape(Cout, 1),
                    ((0, Cop - Cout), (0, 0)))

    per_step = per_m * TM
    resident = 2 * (Cop * Kp * mm_bytes + Cop * 4)
    vmem_limit = int(min(max(per_step + resident + (8 << 20), 16 << 20), 40 << 20))

    cost = pl.CostEstimate(
        flops=2 * Cop * Kp * Mp,
        transcendentals=0,
        bytes_accessed=(Kp * Mp * mm_bytes + Cop * Kp * mm_bytes
                        + Cop * Mp * out_bytes + Cop * 4),
    )

    out = pl.pallas_call(
        _gemm_bias_kernel,
        out_shape=jax.ShapeDtypeStruct((Cop, Mp), out_dtype),
        grid_spec=pltpu.PrefetchScalarGridSpec(
            num_scalar_prefetch=0,
            grid=(Mp // TM,),
            in_specs=[
                pl.BlockSpec((Cop, Kp), lambda m: (0, 0)),   # weights (VMEM-resident)
                pl.BlockSpec((Kp, TM), lambda m: (0, m)),    # activations, M on lanes
                pl.BlockSpec((Cop, 1), lambda m: (0, 0)),    # bias (VMEM-resident)
            ],
            out_specs=pl.BlockSpec((Cop, TM), lambda m: (0, m)),  # lane-dense stores
        ),
        compiler_params=pltpu.CompilerParams(
            dimension_semantics=("parallel",),
            vmem_limit_bytes=vmem_limit),
        cost_estimate=cost,
    )(w_col, x_col, b_col)

    # (Cout, M) -> (Cout, N, Ho, Wo) -> (N, Cout, Ho, Wo): leading-dim permute only.
    out = out[:Cout, :M].reshape(Cout, N, Ho, Wo)
    return jnp.transpose(out, (1, 0, 2, 3))


if __name__ == "__main__":
    key = jax.random.PRNGKey(0)
    N, C, H, W = 2, 4, 16, 16
    Cout, K = 8, 3  # kernel_size=3, stride=1, padding=0 (module defaults)

    k1, k2, k3 = jax.random.split(key, 3)
    x = jax.random.normal(k1, (N, C, H, W), jnp.float32)

    fan_in = (C + 2) * K * K
    bound = float(1.0 / (fan_in ** 0.5))
    weight = jax.random.uniform(k2, (Cout, C + 2, K, K), jnp.float32, -bound, bound)
    bias = jax.random.uniform(k3, (Cout,), jnp.float32, -bound, bound)

    out = jax.block_until_ready(coordconv2d(x, weight, bias))

    # Sanity check against an XLA conv reference with the same bf16-rounded
    # operands (accumulation in f32 on both paths).
    ys = jax.lax.broadcasted_iota(jnp.float32, (H, W), 0)
    xs = jax.lax.broadcasted_iota(jnp.float32, (H, W), 1)
    x_aug_ref = jnp.concatenate(
        [x,
         jnp.broadcast_to(xs[None, None], (N, 1, H, W)),
         jnp.broadcast_to(ys[None, None], (N, 1, H, W))], axis=1)
    xq = x_aug_ref.astype(jnp.bfloat16).astype(jnp.float32)
    wq = weight.astype(jnp.bfloat16).astype(jnp.float32)
    ref = jax.lax.conv_general_dilated(
        xq, wq, window_strides=(1, 1), padding="VALID",
        dimension_numbers=("NCHW", "OIHW", "NCHW"),
        precision=jax.lax.Precision.HIGHEST) + bias[None, :, None, None]

    assert out.shape == (N, Cout, H - K + 1, W - K + 1), out.shape
    assert jnp.allclose(out, ref, atol=2e-3, rtol=2e-3), "mismatch vs XLA conv reference"
    print("KERNEL_OK")
</pallas_src>

<mosaic_0001>
module attributes {stable_mosaic.version = 11 : i64} {
  func.func @_gemm_bias_kernel(%arg0: i32, %arg1: memref<16x64xbf16, #tpu.memory_space<vmem>>, %arg2: memref<64x256xbf16, #tpu.memory_space<vmem>>, %arg3: memref<16x1xf32, #tpu.memory_space<vmem>>, %arg4: memref<16x256xf32, #tpu.memory_space<vmem>>) attributes {dimension_semantics = [#tpu.dimension_semantics<parallel>], iteration_bounds = array<i64: 2>, scalar_prefetch = 0 : i64, scratch_operands = 0 : i64, tpu.core_type = #tpu.core_type<tc>, window_params = [{pipeline_mode = #tpu.pipeline_mode<synchronous>, transform_indices = @transform_0, window_bounds = array<i64: 16, 64>}, {transform_indices = @transform_1, window_bounds = array<i64: 64, 256>}, {pipeline_mode = #tpu.pipeline_mode<synchronous>, transform_indices = @transform_2, window_bounds = array<i64: 16, 1>}, {transform_indices = @transform_3, window_bounds = array<i64: 16, 256>}]} {
    %c0 = arith.constant 0 : index
    %c0_0 = arith.constant 0 : index
    %0 = vector.load %arg1[%c0, %c0_0] : memref<16x64xbf16, #tpu.memory_space<vmem>>, vector<16x64xbf16>
    %c0_1 = arith.constant 0 : index
    %c0_2 = arith.constant 0 : index
    %1 = vector.load %arg2[%c0_1, %c0_2] : memref<64x256xbf16, #tpu.memory_space<vmem>>, vector<64x256xbf16>
    %cst = arith.constant dense<0.000000e+00> : vector<16x256xf32>
    %2 = tpu.matmul %0, %1, %cst {dimension_numbers = #tpu.dot_dimension_numbers<[1], [0], [0], [1], [0, 0, 1, 1], [], []>} : vector<16x64xbf16>, vector<64x256xbf16>, vector<16x256xf32> -> vector<16x256xf32>
    %c0_3 = arith.constant 0 : index
    %c0_4 = arith.constant 0 : index
    %3 = vector.load %arg3[%c0_3, %c0_4] : memref<16x1xf32, #tpu.memory_space<vmem>>, vector<16x1xf32>
    %4 = vector.broadcast %3 : vector<16x1xf32> to vector<16x256xf32>
    %5 = arith.addf %2, %4 : vector<16x256xf32>
    %c0_5 = arith.constant 0 : index
    %c0_6 = arith.constant 0 : index
    %6 = vector.load %arg4[%c0_5, %c0_6] : memref<16x256xf32, #tpu.memory_space<vmem>>, vector<16x256xf32>
    tpu.vector_store %arg4[%c0_5, %c0_6], %5 {strides = array<i32>} : memref<16x256xf32, #tpu.memory_space<vmem>>, vector<16x256xf32>,
    return
  }
  func.func @transform_0(%arg0: i32) -> (i32, i32) {
    %c0_i32 = arith.constant 0 : i32
    %c0_i32_0 = arith.constant 0 : i32
    %c0_i32_1 = arith.constant 0 : i32
    return %c0_i32, %c0_i32_0 : i32, i32
  }
  func.func @transform_1(%arg0: i32) -> (i32, i32) {
    %c0_i32 = arith.constant 0 : i32
    %c0_i32_0 = arith.constant 0 : i32
    return %c0_i32, %arg0 : i32, i32
  }
  func.func @transform_2(%arg0: i32) -> (i32, i32) {
    %c0_i32 = arith.constant 0 : i32
    %c0_i32_0 = arith.constant 0 : i32
    %c0_i32_1 = arith.constant 0 : i32
    return %c0_i32, %c0_i32_0 : i32, i32
  }
  func.func @transform_3(%arg0: i32) -> (i32, i32) {
    %c0_i32 = arith.constant 0 : i32
    %c0_i32_0 = arith.constant 0 : i32
    return %c0_i32, %arg0 : i32, i32
  }
}

</mosaic_0001>

<llo_original>
// kernel: coordconv2d.1
$region0: #{coordconv2d.1}
  #allocation0 [shape = 'u32[]', space=smem, size = 0x4, offset = 0x4, fixed_abs, tag = 'smem constant byte address 0x4 - core index']
  #allocation1 [shape = 'u32[144,128]{1,0:T(1,128)}', space=vmem, size = 0x12000, scoped, tag = 'internal scratch']
  %s0 = inlined_call_operand.vmem [shape: bf16[16,64], index: 0, kind: input, shape index: {}]
  %s1 = inlined_call_operand.vmem [shape: bf16[64,512], index: 1, kind: input, shape index: {}]
  %s2 = inlined_call_operand.vmem [shape: f32[16,1], index: 2, kind: input, shape index: {}]
  %s3 = inlined_call_operand.vmem [shape: f32[16,512], index: 3, kind: output, shape index: {}]
  %s4 = sld [smem:[#allocation0]]
  $region102: #{coordconv2d.1} parent=0
    _
  %s6 = ssub.s32 1, %s4
  %s7 = scalar_select 0, %s6, %s4
  $region1: #{coordconv2d.1} parent=0
    #allocation2 [shape = 'u8[65536]{0}', space=vmem, size = 0x10000, scoped, tag = 'input window, operand 1']
    #allocation3 [shape = 'u8[32768]{0}', space=vmem, size = 0x8000, scoped, tag = 'output window, operand 0']
    loop: start=0, step=1, limit=4
    $region2: #{coordconv2d.1} parent=1 // loop_pre_header
      _
    $region3: #{coordconv2d.1} parent=1 // loop_header
      %s9 = sphi 0, %s13
      %p10 = scmp.ge.s32.totalorder %s9, 4
      %s17 = sphi 0, %s17
      %s19 = sphi 0, %s17
      %s20 = sphi 0, %s19
      %s34 = sphi 0, %s20
      %s40 = sphi 0, %s42
      %s43 = sphi 0, %s40
      %s44 = sphi 0, %s43
      %s60 = sphi 0, %s44
      %s64 = sphi 0, %s64
      %s66 = sphi 0, %s64
      %s67 = sphi 0, %s66
      %s81 = sphi 0, %s67
      %s87 = sphi 0, %s89
      %s90 = sphi 0, %s87
      %s91 = sphi 0, %s90
      %s107 = sphi 0, %s91
    $region4: #{coordconv2d.1} parent=1 // loop_header_branch
      %12 = sbr.rel (%p10) target = $region8
    $region5: #{coordconv2d.1} parent=1 // loop_body
      %s14 = ssub.s32 %s9, 1
      %s15 = ssub.s32 %s9, 2
      %s16 = sadd.s32 %s9, 1
      %s18 = sadd.s32 %s17, 1
      %p21 = scmp.eq.s32.totalorder %s9, 1
      %p22 = scmp.ne.s32.totalorder %s17, %s19
      %p23 = scmp.eq.s32.totalorder %s9, 0
      %p24 = por %p22, %p23
      %p25 = scmp.ne.s32.totalorder %s17, %s19
      %p26 = scmp.eq.s32.totalorder %s14, 1
      %p27 = por %p25, %p26
      %p28 = scmp.ne.s32.totalorder %s19, %s20
      %p29 = scmp.eq.s32.totalorder %s14, 0
      %p30 = por %p28, %p29
      %p31 = scmp.ne.s32.totalorder %s19, %s20
      %p32 = scmp.eq.s32.totalorder %s15, 1
      %p33 = por %p31, %p32
      %p35 = scmp.ne.s32.totalorder %s20, %s34
      %p36 = scmp.eq.s32.totalorder %s15, 0
      %p37 = por %p35, %p36
      %s38 = ssub.s32 %s9, %s16
      %p39 = scmp.eq.s32.totalorder %s38, 0
      %s41 = sadd.s32 %s40, 1
      %s42 = scalar_select %p39, %s40, %s41
      %p45 = pneg %p39
      %p46 = scmp.eq.s32.totalorder %s9, 1
      %p47 = por %p45, %p46
      %p48 = scmp.ne.s32.totalorder %s40, %s43
      %p49 = scmp.eq.s32.totalorder %s9, 0
      %p50 = por %p48, %p49
      %p51 = scmp.ne.s32.totalorder %s40, %s43
      %p52 = scmp.eq.s32.totalorder %s14, 1
      %p53 = por %p51, %p52
      %p54 = scmp.ne.s32.totalorder %s43, %s44
      %p55 = scmp.eq.s32.totalorder %s14, 0
      %p56 = por %p54, %p55
      %p57 = scmp.ne.s32.totalorder %s43, %s44
      %p58 = scmp.eq.s32.totalorder %s15, 1
      %p59 = por %p57, %p58
      %p61 = scmp.ne.s32.totalorder %s44, %s60
      %p62 = scmp.eq.s32.totalorder %s15, 0
      %p63 = por %p61, %p62
      %s65 = sadd.s32 %s64, 1
      %p68 = scmp.eq.s32.totalorder %s9, 1
      %p69 = scmp.ne.s32.totalorder %s64, %s66
      %p70 = scmp.eq.s32.totalorder %s9, 0
      %p71 = por %p69, %p70
      %p72 = scmp.ne.s32.totalorder %s64, %s66
      %p73 = scmp.eq.s32.totalorder %s14, 1
      %p74 = por %p72, %p73
      %p75 = scmp.ne.s32.totalorder %s66, %s67
      %p76 = scmp.eq.s32.totalorder %s14, 0
      %p77 = por %p75, %p76
      %p78 = scmp.ne.s32.totalorder %s66, %s67
      %p79 = scmp.eq.s32.totalorder %s15, 1
      %p80 = por %p78, %p79
      %p82 = scmp.ne.s32.totalorder %s67, %s81
      %p83 = scmp.eq.s32.totalorder %s15, 0
      %p84 = por %p82, %p83
      %s85 = ssub.s32 %s9, %s16
      %p86 = scmp.eq.s32.totalorder %s85, 0
      %s88 = sadd.s32 %s87, 1
      %s89 = scalar_select %p86, %s87, %s88
      %p92 = pneg %p86
      %p93 = scmp.eq.s32.totalorder %s9, 1
      %p94 = por %p92, %p93
      %p95 = scmp.ne.s32.totalorder %s87, %s90
      %p96 = scmp.eq.s32.totalorder %s9, 0
      %p97 = por %p95, %p96
      %p98 = scmp.ne.s32.totalorder %s87, %s90
      %p99 = scmp.eq.s32.totalorder %s14, 1
      %p100 = por %p98, %p99
      %p101 = scmp.ne.s32.totalorder %s90, %s91
      %p102 = scmp.eq.s32.totalorder %s14, 0
      %p103 = por %p101, %p102
      %p104 = scmp.ne.s32.totalorder %s90, %s91
      %p105 = scmp.eq.s32.totalorder %s15, 1
      %p106 = por %p104, %p105
      %p108 = scmp.ne.s32.totalorder %s91, %s107
      %p109 = scmp.eq.s32.totalorder %s15, 0
      %p110 = por %p108, %p109
      %p111 = scmp.le.s32.totalorder 1, %s9
      %p112 = scmp.lt.s32.totalorder %s9, 3
      %p113 = pnand %p111, %p112
      %p114 = pneg %p113
      // Predicated region
      $region9: #{coordconv2d.1} parent=5 // pred_check
        _
      $region10: #{coordconv2d.1} parent=5 // pred_check_branch
        %116 = sbr.rel (%p113) target = $region12
      $region11: #{coordconv2d.1} parent=5 // pred_region
        %s117 = ssub.s32 %s9, 1
        // Predicated region
        $region13: #{coordconv2d.1} parent=11 // pred_check
          %p118 = pneg %p30
        $region14: #{coordconv2d.1} parent=11 // pred_check_branch
          %120 = sbr.rel (%p118) target = $region16
        $region15: #{coordconv2d.1} parent=11 // pred_region
          _
        $region16: #{coordconv2d.1} parent=11 // pred_fallthru
          _
        // Predicated region
        $region17: #{coordconv2d.1} parent=11 // pred_check
          %p121 = pneg %p77
        $region18: #{coordconv2d.1} parent=11 // pred_check_branch
          %123 = sbr.rel (%p121) target = $region20
        $region19: #{coordconv2d.1} parent=11 // pred_region
          _
        $region20: #{coordconv2d.1} parent=11 // pred_fallthru
          _
      $region12: #{coordconv2d.1} parent=5 // pred_fallthru
        _
      %p124 = scmp.lt.s32.totalorder %s9, 2
      // Predicated region
      $region21: #{coordconv2d.1} parent=5 // pred_check
        %p125 = pneg %p124
      $region22: #{coordconv2d.1} parent=5 // pred_check_branch
        %127 = sbr.rel (%p125) target = $region24
      $region23: #{coordconv2d.1} parent=5 // pred_region
        // Predicated region
        $region25: #{coordconv2d.1} parent=23 // pred_check
          %p128 = pneg %p50
        $region26: #{coordconv2d.1} parent=23 // pred_check_branch
          %130 = sbr.rel (%p128) target = $region28
        $region27: #{coordconv2d.1} parent=23 // pred_region
          %s131 = sand.u32 %s40, 1
          %s132 = sand.u32 %s40, 1
          %s133 = smul.addr %s132, 64
          %s134 = scalar_lea.vmem [#allocation2], %s133
          %s135 = smul.u32 2, %s9
          %s136 = smul.addr %s135, 4
          %s137 = scalar_lea.vmem %s1, %s136
          // Predicated region
          $region29: #{coordconv2d.1} parent=27 // pred_check
            _
          $region30: #{coordconv2d.1} parent=27 // pred_check_branch
            %139 = sbr.rel (0) target = $region32
          $region31: #{coordconv2d.1} parent=27 // pred_region
            // Predicated region
            $region33: #{coordconv2d.1} parent=31 // pred_check
              _
            $region34: #{coordconv2d.1} parent=31 // pred_check_branch
              %141 = sbr.rel (0) target = $region36
            $region35: #{coordconv2d.1} parent=31 // pred_region
              // Predicated region
              $region48: #{coordconv2d.1} parent=35 // pred_check
                _
              $region49: #{coordconv2d.1} parent=35 // pred_check_branch
                %171 = sbr.rel (0) target = $region51
              $region50: #{coordconv2d.1} parent=35 // pred_region
                loop: start=0, step=1, limit=1
                $region52: #{coordconv2d.1} parent=50 // loop_pre_header
                  _
                $region53: #{coordconv2d.1} parent=50 // loop_header
                  %s173 = sphi 0, %s177
                  %p174 = scmp.ge.s32.totalorder %s173, 1
                  %s178 = sphi %s137, %s137
                  %s179 = sphi %s134, %s134
                $region54: #{coordconv2d.1} parent=50 // loop_header_branch
                  %176 = sbr.rel (%p174) target = $region58
                $region55: #{coordconv2d.1} parent=50 // loop_body
                  %v180 = vld [vmem:[%s178] sm:$0xff]
                  %181 = vst [vmem:[%s179] sm:$0xff] %v180
                  %v182 = vld [vmem:[%s178 + $0x10] sm:$0xff]
                  %183 = vst [vmem:[%s179 + $0x8] sm:$0xff] %v182
                  %v184 = vld [vmem:[%s178 + $0x20] sm:$0xff]
                  %185 = vst [vmem:[%s179 + $0x10] sm:$0xff] %v184
                  %v186 = vld [vmem:[%s178 + $0x30] sm:$0xff]
                  %187 = vst [vmem:[%s179 + $0x18] sm:$0xff] %v186
                  %v188 = vld [vmem:[%s178 + $0x40] sm:$0xff]
                  %189 = vst [vmem:[%s179 + $0x20] sm:$0xff] %v188
                  %v190 = vld [vmem:[%s178 + $0x50] sm:$0xff]
                  %191 = vst [vmem:[%s179 + $0x28] sm:$0xff] %v190
                  %v192 = vld [vmem:[%s178 + $0x60] sm:$0xff]
                  %193 = vst [vmem:[%s179 + $0x30] sm:$0xff] %v192
                  %v194 = vld [vmem:[%s178 + $0x70] sm:$0xff]
                  %195 = vst [vmem:[%s179 + $0x38] sm:$0xff] %v194
                $region56: #{coordconv2d.1} parent=50 // loop_footer
                  %s177 = sadd.s32 1, %s173
                $region57: #{coordconv2d.1} parent=50 // loop_footer_branch
                  %172 = sbr.rel target = $region53
                $region58: #{coordconv2d.1} parent=50 // loop_exit
                  _
              $region51: #{coordconv2d.1} parent=35 // pred_fallthru
                _
              // Predicated region
              $region59: #{coordconv2d.1} parent=35 // pred_check
                _
              $region60: #{coordconv2d.1} parent=35 // pred_check_branch
                %197 = sbr.rel target = $region62
              $region61: #{coordconv2d.1} parent=35 // pred_region
                _
              $region62: #{coordconv2d.1} parent=35 // pred_fallthru
                _
            $region36: #{coordconv2d.1} parent=31 // pred_fallthru
              _
            // Predicated region
            $region37: #{coordconv2d.1} parent=31 // pred_check
              _
            $region38: #{coordconv2d.1} parent=31 // pred_check_branch
              %143 = sbr.rel target = $region40
            $region39: #{coordconv2d.1} parent=31 // pred_region
              %s145 = ssub.s32 256, 1
              loop: start=0, step=1, limit=1
              $region41: #{coordconv2d.1} parent=39 // loop_pre_header
                _
              $region42: #{coordconv2d.1} parent=39 // loop_header
                %s147 = sphi 0, %s151
                %p148 = scmp.ge.s32.totalorder %s147, 1
                %s152 = sphi %s137, %s137
                %s153 = sphi %s134, %s134
              $region43: #{coordconv2d.1} parent=39 // loop_header_branch
                %150 = sbr.rel (%p148) target = $region47
              $region44: #{coordconv2d.1} parent=39 // loop_body
                %v154 = vld [vmem:[%s152] sm:%s145]
                %155 = vst [vmem:[%s153] sm:%s145] %v154
                %v156 = vld [vmem:[%s152 + $0x10] sm:%s145]
                %157 = vst [vmem:[%s153 + $0x8] sm:%s145] %v156
                %v158 = vld [vmem:[%s152 + $0x20] sm:%s145]
                %159 = vst [vmem:[%s153 + $0x10] sm:%s145] %v158
                %v160 = vld [vmem:[%s152 + $0x30] sm:%s145]
                %161 = vst [vmem:[%s153 + $0x18] sm:%s145] %v160
                %v162 = vld [vmem:[%s152 + $0x40] sm:%s145]
                %163 = vst [vmem:[%s153 + $0x20] sm:%s145] %v162
                %v164 = vld [vmem:[%s152 + $0x50] sm:%s145]
                %165 = vst [vmem:[%s153 + $0x28] sm:%s145] %v164
                %v166 = vld [vmem:[%s152 + $0x60] sm:%s145]
                %167 = vst [vmem:[%s153 + $0x30] sm:%s145] %v166
                %v168 = vld [vmem:[%s152 + $0x70] sm:%s145]
                %169 = vst [vmem:[%s153 + $0x38] sm:%s145] %v168
              $region45: #{coordconv2d.1} parent=39 // loop_footer
                %s151 = sadd.s32 1, %s147
              $region46: #{coordconv2d.1} parent=39 // loop_footer_branch
                %146 = sbr.rel target = $region42
              $region47: #{coordconv2d.1} parent=39 // loop_exit
                _
            $region40: #{coordconv2d.1} parent=31 // pred_fallthru
              _
          $region32: #{coordconv2d.1} parent=27 // pred_fallthru
            _
          %198 = vnop
        $region28: #{coordconv2d.1} parent=23 // pred_fallthru
          _
      $region24: #{coordconv2d.1} parent=5 // pred_fallthru
        _
      %p199 = scmp.le.s32.totalorder 1, %s9
      %p200 = scmp.lt.s32.totalorder %s9, 3
      %p201 = pnand %p199, %p200
      %p202 = pneg %p201
      // Predicated region
      $region63: #{coordconv2d.1} parent=5 // pred_check
        _
      $region64: #{coordconv2d.1} parent=5 // pred_check_branch
        %204 = sbr.rel (%p201) target = $region66
      $region65: #{coordconv2d.1} parent=5 // pred_region
        %s205 = ssub.s32 %s9, 1
        %s206 = sand.u32 %s43, 1
        %s207 = sand.u32 %s43, 1
        %s208 = smul.addr %s207, 64
        %s209 = scalar_lea.vmem [#allocation2], %s208
        // Predicated region
        $region67: #{coordconv2d.1} parent=65 // pred_check
          %p210 = pneg %p56
        $region68: #{coordconv2d.1} parent=65 // pred_check_branch
          %212 = sbr.rel (%p210) target = $region70
        $region69: #{coordconv2d.1} parent=65 // pred_region
          _
        $region70: #{coordconv2d.1} parent=65 // pred_fallthru
          _
        %p213 = pneg %p30
        %p214 = pneg %p27
        %s215 = sand.u32 %s43, 1
        %s216 = sand.u32 %s43, 1
        %s217 = smul.addr %s216, 64
        %s218 = scalar_lea.vmem [#allocation2], %s217
        %p219 = pneg %p56
        %p220 = pneg %p53
        %p221 = pneg %p77
        %p222 = pneg %p74
        %p223 = pneg %p103
        %p224 = pneg %p100
        %s225 = sand.u32 %s90, 1
        %s226 = sand.u32 %s90, 1
        %s227 = smul.addr %s226, 32
        %s228 = scalar_lea.vmem [#allocation3], %s227
        %s229 = smul.u32 2, %s14
        %s230 = smul.u32 2, %s14
        %v232 = vld [vmem:[%s0] sm:$0xf]
        %v233 = vld [vmem:[%s0 + $0x4] sm:$0xf]
        %v234 = vld [vmem:[%s209] sm:$0xff]
        %v235 = vld [vmem:[%s209 + $0x8] sm:$0xff]
        %v236 = vld [vmem:[%s209 + $0x10] sm:$0xff]
        %v237 = vld [vmem:[%s209 + $0x18] sm:$0xff]
        %v238 = vld [vmem:[%s209 + $0x20] sm:$0xff]
        %v239 = vld [vmem:[%s209 + $0x28] sm:$0xff]
        %v240 = vld [vmem:[%s209 + $0x30] sm:$0xff]
        %v241 = vld [vmem:[%s209 + $0x38] sm:$0xff]
        %v242 = vld [vmem:[%s2] sm:$0xff]
        %v243 = vld [vmem:[%s2 + $0x8] sm:$0xff]
        %245 = vset.pattern.permute.xlu0 0
        %246 = vperm.xlu0 %245, %v242
        %v247 = vpop.permute.xlu0 %246
        %250 = vset.pattern.permute.xlu0 0
        %251 = vperm.xlu0 %250, %v243
        %v252 = vpop.permute.xlu0 %251
        %v256 = vunpack.c.l.b16 %v232
        %v257 = vunpack.c.l.b16 %v233
        %v258 = vpack.c.b16 %v257, %v256
        %v267 = vunpack.c.l.b16 %v234
        %v268 = vunpack.c.h.b16 %v234
        %v269 = vunpack.c.l.b16 %v235
        %v270 = vunpack.c.h.b16 %v235
        %v271 = vunpack.c.l.b16 %v236
        %v272 = vunpack.c.h.b16 %v236
        %v273 = vunpack.c.l.b16 %v237
        %v274 = vunpack.c.h.b16 %v237
        %v275 = vunpack.c.l.b16 %v238
        %v276 = vunpack.c.h.b16 %v238
        %v277 = vunpack.c.l.b16 %v239
        %v278 = vunpack.c.h.b16 %v239
        %v279 = vunpack.c.l.b16 %v240
        %v280 = vunpack.c.h.b16 %v240
        %v281 = vunpack.c.l.b16 %v241
        %v282 = vunpack.c.h.b16 %v241
        %v283 = vpack.c.b16 %v269, %v267
        %v284 = vpack.c.b16 %v270, %v268
        %v285 = vpack.c.b16 %v273, %v271
        %v286 = vpack.c.b16 %v274, %v272
        %v287 = vpack.c.b16 %v277, %v275
        %v288 = vpack.c.b16 %v278, %v276
        %v289 = vpack.c.b16 %v281, %v279
        %v290 = vpack.c.b16 %v282, %v280
        %vm299 = vcmask 523264
        %v301 = vsel %vm299, %v258, 0
        %303 = vmatprep.subr.bf16.mxu0 0
        %304 = vmatpush1.bf16.msra.mxu0 0
        %305 = vmatprep.subr.bf16.mxu0 0
        %306 = vmatpush1.bf16.msra.mxu0 0
        %307 = vmatprep.subr.bf16.mxu0 0
        %308 = vmatpush1.bf16.msra.mxu0 0
        %309 = vmatprep.subr.bf16.mxu0 0
        %310 = vmatpush1.bf16.msra.mxu0 0
        %311 = vmatprep.subr.bf16.mxu0 %v290
        %312 = vmatpush1.bf16.msra.mxu0 %v289
        %313 = vmatprep.subr.bf16.mxu0 %v288
        %314 = vmatpush1.bf16.msra.mxu0 %v287
        %315 = vmatprep.subr.bf16.mxu0 %v286
        %316 = vmatpush1.bf16.msra.mxu0 %v285
        %317 = vmatprep.subr.bf16.mxu0 %v284
        %318 = vmatpush1.bf16.msra.mxu0 %v283
        %319 = vmatprep.subr.bf16.mxu0 0
        %320 = vmatpush2.bf16.msra.mxu0 0
        %321 = vmatprep.subr.bf16.mxu0 0
        %322 = vmatpush2.bf16.msra.mxu0 0
        %323 = vmatprep.subr.bf16.mxu0 0
        %324 = vmatpush2.bf16.msra.mxu0 0
        %325 = vmatprep.subr.bf16.mxu0 0
        %326 = vmatpush2.bf16.msra.mxu0 0
        %327 = vmatprep.subr.bf16.mxu0 0
        %328 = vmatpush2.bf16.msra.mxu0 0
        %329 = vmatprep.subr.bf16.mxu0 0
        %330 = vmatpush2.bf16.msra.mxu0 0
        %331 = vmatprep.subr.bf16.mxu0 0
        %332 = vmatpush2.bf16.msra.mxu0 0
        %333 = vmatprep.subr.bf16.mxu0 0
        %334 = vmatpush2.bf16.msra.mxu0 0
        %335 = vmatprep.mubr.bf16.mxu0 0
        %336 = vmatmul.mubr.bf16.gmra.mxu0 %v301
        %v337 = vpop.f32.mrf.mxu0
        %v338 = vadd.f32 %v247, %v337
        %v339 = vpop.f32.mrf.mxu0
        %v340 = vadd.f32 %v247, %v339
        %v341 = vpop.f32.mrf.mxu0
        %v342 = vadd.f32 %v252, %v341
        %v343 = vpop.f32.mrf.mxu0
        %v344 = vadd.f32 %v252, %v343
        %345 = vdwg.mxu0
        %346 = vst [vmem:[%s228] sm:$0xff] %v338
        %347 = vst [vmem:[%s228 + $0x8] sm:$0xff] %v340
        %348 = vst [vmem:[%s228 + $0x10] sm:$0xff] %v342
        %349 = vst [vmem:[%s228 + $0x18] sm:$0xff] %v344
        %s350 = sand.u32 %s90, 1
        %s351 = sand.u32 %s90, 1
        %s352 = smul.addr %s351, 32
        %s353 = scalar_lea.vmem [#allocation3], %s352
        // Predicated region
        $region71: #{coordconv2d.1} parent=65 // pred_check
          %p354 = pneg %p100
        $region72: #{coordconv2d.1} parent=65 // pred_check_branch
          %356 = sbr.rel (%p354) target = $region74
        $region73: #{coordconv2d.1} parent=65 // pred_region
          %s357 = smul.u32 2, %s14
          %s358 = smul.addr %s357, 8
          %s359 = scalar_lea.vmem %s3, %s358
          // Predicated region
          $region75: #{coordconv2d.1} parent=73 // pred_check
            _
          $region76: #{coordconv2d.1} parent=73 // pred_check_branch
            %361 = sbr.rel (0) target = $region78
          $region77: #{coordconv2d.1} parent=73 // pred_region
            // Predicated region
            $region79: #{coordconv2d.1} parent=77 // pred_check
              _
            $region80: #{coordconv2d.1} parent=77 // pred_check_branch
              %363 = sbr.rel (0) target = $region82
            $region81: #{coordconv2d.1} parent=77 // pred_region
              loop: start=0, step=1, limit=1
              $region83: #{coordconv2d.1} parent=81 // loop_pre_header
                _
              $region84: #{coordconv2d.1} parent=81 // loop_header
                %s365 = sphi 0, %s369
                %p366 = scmp.ge.s32.totalorder %s365, 1
                %s370 = sphi %s353, %s353
                %s371 = sphi %s359, %s359
              $region85: #{coordconv2d.1} parent=81 // loop_header_branch
                %368 = sbr.rel (%p366) target = $region89
              $region86: #{coordconv2d.1} parent=81 // loop_body
                %v372 = vld [vmem:[%s370] sm:$0xff]
                %373 = vst [vmem:[%s371] sm:$0xff] %v372
                %v374 = vld [vmem:[%s370 + $0x8] sm:$0xff]
                %375 = vst [vmem:[%s371 + $0x8] sm:$0xff] %v374
                %v376 = vld [vmem:[%s370 + $0x10] sm:$0xff]
                %377 = vst [vmem:[%s371 + $0x20] sm:$0xff] %v376
                %v378 = vld [vmem:[%s370 + $0x18] sm:$0xff]
                %379 = vst [vmem:[%s371 + $0x28] sm:$0xff] %v378
              $region87: #{coordconv2d.1} parent=81 // loop_footer
                %s369 = sadd.s32 1, %s365
              $region88: #{coordconv2d.1} parent=81 // loop_footer_branch
                %364 = sbr.rel target = $region84
              $region89: #{coordconv2d.1} parent=81 // loop_exit
                _
            $region82: #{coordconv2d.1} parent=77 // pred_fallthru
              _
            // Predicated region
            $region90: #{coordconv2d.1} parent=77 // pred_check
              _
            $region91: #{coordconv2d.1} parent=77 // pred_check_branch
              %381 = sbr.rel target = $region93
            $region92: #{coordconv2d.1} parent=77 // pred_region
              _
            $region93: #{coordconv2d.1} parent=77 // pred_fallthru
              _
          $region78: #{coordconv2d.1} parent=73 // pred_fallthru
            _
          %382 = vnop
        $region74: #{coordconv2d.1} parent=65 // pred_fallthru
          _
      $region66: #{coordconv2d.1} parent=5 // pred_fallthru
        _
      %p383 = scmp.le.s32.totalorder 2, %s9
      // Predicated region
      $region94: #{coordconv2d.1} parent=5 // pred_check
        %p384 = pneg %p383
      $region95: #{coordconv2d.1} parent=5 // pred_check_branch
        %386 = sbr.rel (%p384) target = $region97
      $region96: #{coordconv2d.1} parent=5 // pred_region
        %s387 = ssub.s32 %s9, 2
        // Predicated region
        $region98: #{coordconv2d.1} parent=96 // pred_check
          %p388 = pneg %p106
        $region99: #{coordconv2d.1} parent=96 // pred_check_branch
          %390 = sbr.rel (%p388) target = $region101
        $region100: #{coordconv2d.1} parent=96 // pred_region
          %s391 = sand.u32 %s91, 1
          %s392 = sand.u32 %s91, 1
          %s393 = smul.addr %s392, 32
          %s394 = scalar_lea.vmem [#allocation3], %s393
        $region101: #{coordconv2d.1} parent=96 // pred_fallthru
          _
      $region97: #{coordconv2d.1} parent=5 // pred_fallthru
        _
    $region6: #{coordconv2d.1} parent=1 // loop_footer
      %s13 = sadd.s32 1, %s9
    $region7: #{coordconv2d.1} parent=1 // loop_footer_branch
      %8 = sbr.rel target = $region3
    $region8: #{coordconv2d.1} parent=1 // loop_exit
      _

</llo_original>
